<compile_context>
chip_gen: v5e
topology: v5e:2x2
jax: 0.10.0
libtpu: 0.0.40
codegen_flags: <defaults>
</compile_context>

<pallas_src>
import itertools

import jax
import jax.numpy as jnp
import numpy as np
from jax import lax
from jax.experimental import pallas as pl
from jax.experimental.pallas import tpu as pltpu


def _triple(v):
    return (v, v, v) if isinstance(v, int) else tuple(v)


def _round_up(x, m):
    return ((x + m - 1) // m) * m


def _phase_taps(K, S, P, out_size):
    """Phase decomposition of a 1-D transposed conv axis.

    For output index o = S*q + r (phase r):  y[o] = sum_k x[q + t_k] * w[k],
    where k runs over {k in [0,K): k == (r + P) mod S} and t_k = (r + P - k) / S.
    Returns, per phase r, (q_len, [(k, t), ...]).
    """
    phases = []
    for r in range(S):
        q_len = (out_size - 1 - r) // S + 1
        taps = [(k, (r + P - k) // S) for k in range(K) if (k - (r + P)) % S == 0]
        phases.append((q_len, taps))
    return phases


def _phase_gemm_kernel(a_ref, w_ref, b_ref, o_ref):
    """o[p, n] = w[p] @ a[p, n] + bias   (Cout on sublanes, M on lanes).

    a: (1, 1, Kc_pad, TM) operand dtype     w: (1, Cout_pad, Kc_pad) operand dtype
    b: (Cout_pad, 1) f32                    o: (1, 1, Cout_pad, TM) f32
    """
    acc = jnp.dot(w_ref[0], a_ref[0, 0], preferred_element_type=jnp.float32)
    o_ref[0, 0] = acc + b_ref[...]


def cylindrical_conv_trans(x, weight, bias, *, kernel_size=(3, 4, 4),
                           stride=(1, 2, 2), padding=1, output_padding=0,
                           groups=1, operand_dtype=jnp.bfloat16,
                           max_tile=8192, vmem_block_budget=8 * 1024 * 1024):
    """Forward pass of CylindricalConvTrans.

    x:      (N, Cin, D, H, W)        NCDHW (PyTorch convention)
    weight: (Cin, Cout, Kd, Kh, Kw)  PyTorch ConvTranspose3d layout (groups=1)
    bias:   (Cout,)
    returns (N, Cout, Do, Ho, Wo)    NCDHW f32, matching the PyTorch module.
    """
    if groups != 1:
        raise NotImplementedError("groups > 1 not implemented")

    kernel_size = _triple(kernel_size)
    stride = _triple(stride)
    output_padding = _triple(output_padding)
    padding_orig = list(_triple(padding))
    conv_pad = list(padding_orig)
    conv_pad[1] = kernel_size[1] - 1          # exactly what the nn.Module __init__ does

    Kd, Kh, Kw = kernel_size
    Sd, Sh, Sw = stride
    N, Cin, D, H, W = x.shape
    Cout = weight.shape[1]

    # ---- circular pad along H (axis 3); matches F.pad(..., mode='circular') ----
    circ = padding_orig[1]
    if circ > 0:
        x = jnp.concatenate([x[:, :, :, H - circ:, :], x, x[:, :, :, :circ, :]], axis=3)
    Hc = H + 2 * circ

    in_sizes = (D, Hc, W)
    ks, ss, ps, ops = (Kd, Kh, Kw), (Sd, Sh, Sw), tuple(conv_pad), output_padding
    out_sizes = tuple((i - 1) * s - 2 * p + k + op
                      for i, s, p, k, op in zip(in_sizes, ss, ps, ks, ops))

    # ---- per-axis phase tap tables + zero-pad bounds for the un-dilated input ----
    axis_phases, q_sizes, tap_counts, pad_los = [], [], [], []
    pad_cfg = [(0, 0), (0, 0)]
    for i_sz, k_sz, s_sz, p_sz, o_sz in zip(in_sizes, ks, ss, ps, out_sizes):
        phases = _phase_taps(k_sz, s_sz, p_sz, o_sz)
        q_lens = {q for q, _ in phases}
        if len(q_lens) != 1:
            raise NotImplementedError(
                "non-uniform output phases (e.g. output_padding with stride>1) "
                "not supported")
        q_len = q_lens.pop()
        t_count = max(len(t) for _, t in phases)
        padded_phases, all_t = [], []
        for _, taps in phases:
            base_t = taps[0][1] if taps else 0
            taps = list(taps) + [(-1, base_t)] * (t_count - len(taps))  # zero-weight dummies
            padded_phases.append(taps)
            all_t.extend(t for _, t in taps)
        t_min, t_max = min(all_t), max(all_t)
        pad_lo = max(0, -t_min)
        pad_hi = max(0, (q_len - 1) + t_max - (i_sz - 1))
        axis_phases.append(padded_phases)
        q_sizes.append(q_len)
        tap_counts.append(t_count)
        pad_los.append(pad_lo)
        pad_cfg.append((pad_lo, pad_hi))

    Qd, Qh, Qw = q_sizes
    Td, Th, Tw = tap_counts
    T = Td * Th * Tw
    Kc = Cin * T
    M_sp = Qd * Qh * Qw
    P_total = Sd * Sh * Sw

    # ---- XLA glue: zero-pad borders and build minimal per-phase im2col (channel-major,
    #      pixel-minor -> no NDHWC transpose needed; NCDHW is already the right order) ----
    xo = jnp.pad(x.astype(operand_dtype), pad_cfg)
    w_op = weight.astype(operand_dtype)

    a_phases, w_phases = [], []
    for pd, ph_, pw_ in itertools.product(range(Sd), range(Sh), range(Sw)):
        slices, wcols = [], []
        for (kd, td), (kh, th), (kw, tw) in itertools.product(
                axis_phases[0][pd], axis_phases[1][ph_], axis_phases[2][pw_]):
            d0, h0, w0 = td + pad_los[0], th + pad_los[1], tw + pad_los[2]
            slices.append(lax.slice(xo, (0, 0, d0, h0, w0),
                                    (N, Cin, d0 + Qd, h0 + Qh, w0 + Qw)))
            if kd < 0 or kh < 0 or kw < 0:   # dummy tap (phase with fewer real taps)
                wcols.append(jnp.zeros((Cin, Cout), w_op.dtype))
            else:
                wcols.append(w_op[:, :, kd, kh, kw])
        a_p = jnp.stack(slices, axis=2)                    # (N, Cin, T, Qd, Qh, Qw)
        a_phases.append(a_p.reshape(N, Kc, M_sp))          # rows: cin*T + tap
        w_p = jnp.stack(wcols, axis=1)                     # (Cin, T, Cout)
        w_phases.append(jnp.transpose(w_p, (2, 0, 1)).reshape(Cout, Kc))

    A = jnp.stack(a_phases, axis=0)                        # (P, N, Kc, M_sp)
    Wm = jnp.stack(w_phases, axis=0)                       # (P, Cout, Kc)

    # ---- padding: Kc -> multiple of 128 (MXU-friendly contraction; exact when
    #      Cin % 32 == 0), Cout -> multiple of 8 (sublanes), M -> multiple of the tile ----
    Kc_pad = _round_up(Kc, 128)
    Cout_pad = _round_up(Cout, 8)

    # M tile: largest 128-multiple within a conservative VMEM block budget
    # (double-buffered A + double-buffered f32 out + weight + bias), capped.
    per_col = 4 * Kc_pad + 8 * Cout_pad
    fixed = 4 * Cout_pad * Kc_pad + 4 * Cout_pad
    tm = (vmem_block_budget - fixed) // per_col
    tm = max(128, min(max_tile, tm))
    tm = (tm // 128) * 128
    tm = min(tm, _round_up(M_sp, 128))
    M_pad = _round_up(M_sp, tm)

    if Kc_pad != Kc or M_pad != M_sp:
        A = jnp.pad(A, ((0, 0), (0, 0), (0, Kc_pad - Kc), (0, M_pad - M_sp)))
    if Kc_pad != Kc or Cout_pad != Cout:
        Wm = jnp.pad(Wm, ((0, 0), (0, Cout_pad - Cout), (0, Kc_pad - Kc)))
    bias2 = jnp.pad(bias.astype(jnp.float32), (0, Cout_pad - Cout)).reshape(Cout_pad, 1)

    # ---- Pallas kernel: batched per-phase GEMM with f32 accumulation.
    #      Weight/bias blocks are grid-invariant along (n, m) -> re-DMA'd only when the
    #      phase changes, and tiny, so no special buffering is required on any gen. ----
    out = pl.pallas_call(
        _phase_gemm_kernel,
        out_shape=jax.ShapeDtypeStruct((P_total, N, Cout_pad, M_pad), jnp.float32),
        grid=(P_total, N, M_pad // tm),
        in_specs=[
            pl.BlockSpec((1, 1, Kc_pad, tm), lambda p, n, m: (p, n, 0, m)),
            pl.BlockSpec((1, Cout_pad, Kc_pad), lambda p, n, m: (p, 0, 0)),
            pl.BlockSpec((Cout_pad, 1), lambda p, n, m: (0, 0)),
        ],
        out_specs=pl.BlockSpec((1, 1, Cout_pad, tm), lambda p, n, m: (p, n, 0, m)),
        compiler_params=pltpu.CompilerParams(
            dimension_semantics=("parallel", "parallel", "parallel"),
            vmem_limit_bytes=32 * 1024 * 1024),
    )(A, Wm, bias2)

    # ---- interleave phases back into the full output (o = q * S + r per axis) ----
    out = out[:, :, :Cout, :M_sp]
    out = out.reshape(Sd, Sh, Sw, N, Cout, Qd, Qh, Qw)
    out = jnp.transpose(out, (3, 4, 5, 0, 6, 1, 7, 2))
    return out.reshape(N, Cout, Qd * Sd, Qh * Sh, Qw * Sw)


def _reference(x, weight, bias, *, kernel_size=(3, 4, 4), stride=(1, 2, 2),
               padding=1, output_padding=0):
    """Pure-JAX reference mirroring the PyTorch forward (circular H pad + ConvTranspose3d)."""
    kernel_size = _triple(kernel_size)
    stride = _triple(stride)
    output_padding = _triple(output_padding)
    padding_orig = list(_triple(padding))
    conv_pad = list(padding_orig)
    conv_pad[1] = kernel_size[1] - 1
    Kd, Kh, Kw = kernel_size
    Pd, Ph, Pw = conv_pad
    opd, oph, opw = output_padding
    circ = padding_orig[1]
    H = x.shape[3]
    if circ > 0:
        x = jnp.concatenate([x[:, :, :, H - circ:, :], x, x[:, :, :, :circ, :]], axis=3)
    w = jnp.transpose(weight[:, :, ::-1, ::-1, ::-1], (1, 0, 2, 3, 4))  # OIDHW, flipped
    out = lax.conv_general_dilated(
        x.astype(jnp.float32), w.astype(jnp.float32),
        window_strides=(1, 1, 1),
        padding=[(Kd - 1 - Pd, Kd - 1 - Pd + opd),
                 (Kh - 1 - Ph, Kh - 1 - Ph + oph),
                 (Kw - 1 - Pw, Kw - 1 - Pw + opw)],
        lhs_dilation=stride,
        dimension_numbers=("NCDHW", "OIDHW", "NCDHW"),
        precision=lax.Precision.HIGHEST)
    return out + bias.reshape(1, -1, 1, 1, 1)


if __name__ == "__main__":
    key = jax.random.PRNGKey(0)
    kx, kw, kb = jax.random.split(key, 3)

    N, Cin, Cout = 2, 4, 8
    D, H, W = 4, 8, 8
    kernel_size, stride, padding, output_padding = (3, 4, 4), (1, 2, 2), 1, 0

    x = jax.random.normal(kx, (N, Cin, D, H, W), dtype=jnp.float32)
    fan = Cin * kernel_size[0] * kernel_size[1] * kernel_size[2]
    bound = 1.0 / np.sqrt(fan)
    weight = jax.random.uniform(kw, (Cin, Cout) + kernel_size, jnp.float32, -bound, bound)
    bias = jax.random.uniform(kb, (Cout,), jnp.float32, -bound, bound)

    # Quantize operands to bf16-representable values so the bf16-operand kernel and
    # the f32 reference see identical inputs (products are exact in f32, accumulation
    # is f32 in both paths).
    x = x.astype(jnp.bfloat16).astype(jnp.float32)
    weight = weight.astype(jnp.bfloat16).astype(jnp.float32)

    out = cylindrical_conv_trans(x, weight, bias, kernel_size=kernel_size,
                                 stride=stride, padding=padding,
                                 output_padding=output_padding)
    out = jax.block_until_ready(out)

    ref = _reference(x, weight, bias, kernel_size=kernel_size, stride=stride,
                     padding=padding, output_padding=output_padding)
    assert out.shape == (N, Cout, D, 2 * H, 2 * W), out.shape
    np.testing.assert_allclose(np.asarray(out), np.asarray(ref), rtol=1e-3, atol=1e-3)

    print("KERNEL_OK")
</pallas_src>

<mosaic_0001>
module attributes {stable_mosaic.version = 11 : i64} {
  func.func @_phase_gemm_kernel(%arg0: i32, %arg1: i32, %arg2: i32, %arg3: memref<1x1x128x256xbf16, #tpu.memory_space<vmem>>, %arg4: memref<1x8x128xbf16, #tpu.memory_space<vmem>>, %arg5: memref<8x1xf32, #tpu.memory_space<vmem>>, %arg6: memref<1x1x8x256xf32, #tpu.memory_space<vmem>>) attributes {dimension_semantics = [#tpu.dimension_semantics<parallel>, #tpu.dimension_semantics<parallel>, #tpu.dimension_semantics<parallel>], iteration_bounds = array<i64: 4, 2, 1>, scalar_prefetch = 0 : i64, scratch_operands = 0 : i64, tpu.core_type = #tpu.core_type<tc>, window_params = [{transform_indices = @transform_0, window_bounds = array<i64: 1, 1, 128, 256>}, {transform_indices = @transform_1, window_bounds = array<i64: 1, 8, 128>}, {pipeline_mode = #tpu.pipeline_mode<synchronous>, transform_indices = @transform_2, window_bounds = array<i64: 8, 1>}, {transform_indices = @transform_3, window_bounds = array<i64: 1, 1, 8, 256>}]} {
    %c0 = arith.constant 0 : index
    %c0_0 = arith.constant 0 : index
    %c0_1 = arith.constant 0 : index
    %0 = vector.load %arg4[%c0, %c0_0, %c0_1] : memref<1x8x128xbf16, #tpu.memory_space<vmem>>, vector<1x8x128xbf16>
    %1 = vector.shape_cast %0 : vector<1x8x128xbf16> to vector<8x128xbf16>
    %c0_2 = arith.constant 0 : index
    %c0_3 = arith.constant 0 : index
    %c0_4 = arith.constant 0 : index
    %c0_5 = arith.constant 0 : index
    %2 = vector.load %arg3[%c0_2, %c0_3, %c0_4, %c0_5] : memref<1x1x128x256xbf16, #tpu.memory_space<vmem>>, vector<1x1x128x256xbf16>
    %3 = vector.shape_cast %2 : vector<1x1x128x256xbf16> to vector<128x256xbf16>
    %cst = arith.constant dense<0.000000e+00> : vector<8x256xf32>
    %4 = tpu.matmul %1, %3, %cst {dimension_numbers = #tpu.dot_dimension_numbers<[1], [0], [0], [1], [0, 0, 1, 1], [], []>} : vector<8x128xbf16>, vector<128x256xbf16>, vector<8x256xf32> -> vector<8x256xf32>
    %c0_6 = arith.constant 0 : index
    %c0_7 = arith.constant 0 : index
    %5 = vector.load %arg5[%c0_6, %c0_7] : memref<8x1xf32, #tpu.memory_space<vmem>>, vector<8x1xf32>
    %6 = vector.broadcast %5 : vector<8x1xf32> to vector<8x256xf32>
    %7 = arith.addf %4, %6 : vector<8x256xf32>
    %c0_8 = arith.constant 0 : index
    %c0_9 = arith.constant 0 : index
    %c0_10 = arith.constant 0 : index
    %c0_11 = arith.constant 0 : index
    %8 = vector.load %arg6[%c0_8, %c0_9, %c0_10, %c0_11] : memref<1x1x8x256xf32, #tpu.memory_space<vmem>>, vector<1x1x8x256xf32>
    %9 = vector.shape_cast %8 : vector<1x1x8x256xf32> to vector<8x256xf32>
    %10 = vector.shape_cast %7 : vector<8x256xf32> to vector<1x1x8x256xf32>
    tpu.vector_store %arg6[%c0_8, %c0_9, %c0_10, %c0_11], %10 {strides = array<i32>} : memref<1x1x8x256xf32, #tpu.memory_space<vmem>>, vector<1x1x8x256xf32>,
    return
  }
  func.func @transform_0(%arg0: i32, %arg1: i32, %arg2: i32) -> (i32, i32, i32, i32) {
    %c0_i32 = arith.constant 0 : i32
    %c0_i32_0 = arith.constant 0 : i32
    return %arg0, %arg1, %c0_i32, %arg2 : i32, i32, i32, i32
  }
  func.func @transform_1(%arg0: i32, %arg1: i32, %arg2: i32) -> (i32, i32, i32) {
    %c0_i32 = arith.constant 0 : i32
    %c0_i32_0 = arith.constant 0 : i32
    %c0_i32_1 = arith.constant 0 : i32
    return %arg0, %c0_i32, %c0_i32_0 : i32, i32, i32
  }
  func.func @transform_2(%arg0: i32, %arg1: i32, %arg2: i32) -> (i32, i32) {
    %c0_i32 = arith.constant 0 : i32
    %c0_i32_0 = arith.constant 0 : i32
    %c0_i32_1 = arith.constant 0 : i32
    return %c0_i32, %c0_i32_0 : i32, i32
  }
  func.func @transform_3(%arg0: i32, %arg1: i32, %arg2: i32) -> (i32, i32, i32, i32) {
    %c0_i32 = arith.constant 0 : i32
    %c0_i32_0 = arith.constant 0 : i32
    return %arg0, %arg1, %c0_i32, %arg2 : i32, i32, i32, i32
  }
}

</mosaic_0001>

<llo_original>
// kernel: tpu_custom_call.1
$region0: #{tpu_custom_call.1}
  #allocation0 [shape = 'u32[]', space=smem, size = 0x4, offset = 0x4, fixed_abs, tag = 'smem constant byte address 0x4 - core index']
  #allocation1 [shape = 'u32[72,128]{1,0:T(1,128)}', space=vmem, size = 0x9000, scoped, tag = 'internal scratch']
  %s0 = inlined_call_operand.hbm [shape: bf16[4,2,128,256], index: 0, kind: input, shape index: {}]
  %s1 = inlined_call_operand.hbm [shape: bf16[4,8,128], index: 1, kind: input, shape index: {}]
  %s2 = inlined_call_operand.vmem [shape: f32[8,1], index: 2, kind: input, shape index: {}]
  %s3 = inlined_call_operand.hbm [shape: f32[4,2,8,256], index: 3, kind: output, shape index: {}]
  %s4 = sld [smem:[#allocation0]]
  $region53: #{tpu_custom_call.1} parent=0
    _
  %s6 = ssub.s32 1, %s4
  %s7 = scalar_select 0, %s6, %s4
  $region1: #{tpu_custom_call.1} parent=0
    #allocation2 [shape = 'u8[131072]{0}', space=vmem, size = 0x20000, scoped, tag = 'input window, operand 0']
    #allocation3 [shape = 's32[2]{0}', space=sflag, size = 0x8, scoped, tag = 'scoped memory for tpu_custom_call.1']
    #allocation4 [shape = 's32[2]{0}', space=sflag, size = 0x8, scoped, tag = 'scoped memory for tpu_custom_call.1']
    #allocation5 [shape = 'u8[4096]{0}', space=vmem, size = 0x1000, scoped, tag = 'input window, operand 1']
    #allocation6 [shape = 's32[2]{0}', space=sflag, size = 0x8, scoped, tag = 'scoped memory for tpu_custom_call.1']
    #allocation7 [shape = 'u8[16384]{0}', space=vmem, size = 0x4000, scoped, tag = 'output window, operand 0']
    %8 = vsyncpa [#allocation3], 0
    %s9 = scalar_lea.sflag [#allocation3], 1
    %10 = vsyncpa %s9, 0
    %11 = vsyncpa [#allocation6], 0
    %s12 = scalar_lea.sflag [#allocation6], 1
    %13 = vsyncpa %s12, 0
    %14 = vsyncpa [#allocation4], 0
    %s15 = scalar_lea.sflag [#allocation4], 1
    %16 = vsyncpa %s15, 0
    loop: start=0, step=1, limit=10
    $region2: #{tpu_custom_call.1} parent=1 // loop_pre_header
      _
    $region3: #{tpu_custom_call.1} parent=1 // loop_header
      %s18 = sphi 0, %s22
      %p19 = scmp.ge.s32.totalorder %s18, 10
      %s25 = sphi 0, %s44
      %s26 = sphi 0, %s40
      %s27 = sphi 0, %s36
      %s28 = sphi 0, %s25
      %s29 = sphi 0, %s26
      %s30 = sphi 0, %s27
      %s31 = sphi 0, %s28
      %s32 = sphi 0, %s29
      %s33 = sphi 0, %s30
      %s51 = sphi 0, %s53
      %s54 = sphi 0, %s51
      %s55 = sphi 0, %s54
      %s71 = sphi 0, %s55
      %s77 = sphi 0, %s79
      %s80 = sphi 0, %s77
      %s81 = sphi 0, %s80
      %s97 = sphi 0, %s81
      %s101 = sphi 0, %s101
      %s103 = sphi 0, %s101
      %s104 = sphi 0, %s103
      %s118 = sphi 0, %s104
      %s128 = sphi 0, %s130
      %s131 = sphi 0, %s128
      %s132 = sphi 0, %s131
      %s148 = sphi 0, %s132
    $region4: #{tpu_custom_call.1} parent=1 // loop_header_branch
      %21 = sbr.rel (%p19) target = $region8
    $region5: #{tpu_custom_call.1} parent=1 // loop_body
      %s23 = ssub.s32 %s18, 1
      %s24 = ssub.s32 %s18, 2
      %s34 = sadd.s32 1, %s27
      %p35 = scmp.ge.s32.totalorder %s34, 1
      %s36 = scalar_select %p35, 0, %s34
      %s37 = sadd.s32 1, %s26
      %s38 = scalar_select %p35, %s37, %s26
      %p39 = scmp.ge.s32.totalorder %s38, 2
      %s40 = scalar_select %p39, 0, %s38
      %s41 = sadd.s32 1, %s25
      %s42 = scalar_select %p39, %s41, %s25
      %p43 = scmp.ge.s32.totalorder %s42, 4
      %s44 = scalar_select %p43, 0, %s42
      %s45 = ssub.s32 %s25, %s44
      %s46 = ssub.s32 %s26, %s40
      %s47 = sor.u32 %s45, %s46
      %s48 = ssub.s32 %s27, %s36
      %s49 = sor.u32 %s47, %s48
      %p50 = scmp.eq.s32.totalorder %s49, 0
      %s52 = sadd.s32 %s51, 1
      %s53 = scalar_select %p50, %s51, %s52
      %p56 = pneg %p50
      %p57 = scmp.eq.s32.totalorder %s18, 7
      %p58 = por %p56, %p57
      %p59 = scmp.ne.s32.totalorder %s51, %s54
      %p60 = scmp.eq.s32.totalorder %s18, 0
      %p61 = por %p59, %p60
      %p62 = scmp.ne.s32.totalorder %s51, %s54
      %p63 = scmp.eq.s32.totalorder %s23, 7
      %p64 = por %p62, %p63
      %p65 = scmp.ne.s32.totalorder %s54, %s55
      %p66 = scmp.eq.s32.totalorder %s23, 0
      %p67 = por %p65, %p66
      %p68 = scmp.ne.s32.totalorder %s54, %s55
      %p69 = scmp.eq.s32.totalorder %s24, 7
      %p70 = por %p68, %p69
      %p72 = scmp.ne.s32.totalorder %s55, %s71
      %p73 = scmp.eq.s32.totalorder %s24, 0
      %p74 = por %p72, %p73
      %s75 = ssub.s32 %s25, %s44
      %p76 = scmp.eq.s32.totalorder %s75, 0
      %s78 = sadd.s32 %s77, 1
      %s79 = scalar_select %p76, %s77, %s78
      %p82 = pneg %p76
      %p83 = scmp.eq.s32.totalorder %s18, 7
      %p84 = por %p82, %p83
      %p85 = scmp.ne.s32.totalorder %s77, %s80
      %p86 = scmp.eq.s32.totalorder %s18, 0
      %p87 = por %p85, %p86
      %p88 = scmp.ne.s32.totalorder %s77, %s80
      %p89 = scmp.eq.s32.totalorder %s23, 7
      %p90 = por %p88, %p89
      %p91 = scmp.ne.s32.totalorder %s80, %s81
      %p92 = scmp.eq.s32.totalorder %s23, 0
      %p93 = por %p91, %p92
      %p94 = scmp.ne.s32.totalorder %s80, %s81
      %p95 = scmp.eq.s32.totalorder %s24, 7
      %p96 = por %p94, %p95
      %p98 = scmp.ne.s32.totalorder %s81, %s97
      %p99 = scmp.eq.s32.totalorder %s24, 0
      %p100 = por %p98, %p99
      %s102 = sadd.s32 %s101, 1
      %p105 = scmp.eq.s32.totalorder %s18, 7
      %p106 = scmp.ne.s32.totalorder %s101, %s103
      %p107 = scmp.eq.s32.totalorder %s18, 0
      %p108 = por %p106, %p107
      %p109 = scmp.ne.s32.totalorder %s101, %s103
      %p110 = scmp.eq.s32.totalorder %s23, 7
      %p111 = por %p109, %p110
      %p112 = scmp.ne.s32.totalorder %s103, %s104
      %p113 = scmp.eq.s32.totalorder %s23, 0
      %p114 = por %p112, %p113
      %p115 = scmp.ne.s32.totalorder %s103, %s104
      %p116 = scmp.eq.s32.totalorder %s24, 7
      %p117 = por %p115, %p116
      %p119 = scmp.ne.s32.totalorder %s104, %s118
      %p120 = scmp.eq.s32.totalorder %s24, 0
      %p121 = por %p119, %p120
      %s122 = ssub.s32 %s25, %s44
      %s123 = ssub.s32 %s26, %s40
      %s124 = sor.u32 %s122, %s123
      %s125 = ssub.s32 %s27, %s36
      %s126 = sor.u32 %s124, %s125
      %p127 = scmp.eq.s32.totalorder %s126, 0
      %s129 = sadd.s32 %s128, 1
      %s130 = scalar_select %p127, %s128, %s129
      %p133 = pneg %p127
      %p134 = scmp.eq.s32.totalorder %s18, 7
      %p135 = por %p133, %p134
      %p136 = scmp.ne.s32.totalorder %s128, %s131
      %p137 = scmp.eq.s32.totalorder %s18, 0
      %p138 = por %p136, %p137
      %p139 = scmp.ne.s32.totalorder %s128, %s131
      %p140 = scmp.eq.s32.totalorder %s23, 7
      %p141 = por %p139, %p140
      %p142 = scmp.ne.s32.totalorder %s131, %s132
      %p143 = scmp.eq.s32.totalorder %s23, 0
      %p144 = por %p142, %p143
      %p145 = scmp.ne.s32.totalorder %s131, %s132
      %p146 = scmp.eq.s32.totalorder %s24, 7
      %p147 = por %p145, %p146
      %p149 = scmp.ne.s32.totalorder %s132, %s148
      %p150 = scmp.eq.s32.totalorder %s24, 0
      %p151 = por %p149, %p150
      %p152 = scmp.le.s32.totalorder 1, %s18
      %p153 = scmp.lt.s32.totalorder %s18, 9
      %p154 = pnand %p152, %p153
      %p155 = pneg %p154
      // Predicated region
      $region9: #{tpu_custom_call.1} parent=5 // pred_check
        _
      $region10: #{tpu_custom_call.1} parent=5 // pred_check_branch
        %157 = sbr.rel (%p154) target = $region12
      $region11: #{tpu_custom_call.1} parent=5 // pred_region
        %s158 = ssub.s32 %s18, 1
        // Predicated region
        $region13: #{tpu_custom_call.1} parent=11 // pred_check
          %p159 = pneg %p114
        $region14: #{tpu_custom_call.1} parent=11 // pred_check_branch
          %161 = sbr.rel (%p159) target = $region16
        $region15: #{tpu_custom_call.1} parent=11 // pred_region
          _
        $region16: #{tpu_custom_call.1} parent=11 // pred_fallthru
          _
      $region12: #{tpu_custom_call.1} parent=5 // pred_fallthru
        _
      %p162 = scmp.lt.s32.totalorder %s18, 8
      // Predicated region
      $region17: #{tpu_custom_call.1} parent=5 // pred_check
        %p163 = pneg %p162
      $region18: #{tpu_custom_call.1} parent=5 // pred_check_branch
        %165 = sbr.rel (%p163) target = $region20
      $region19: #{tpu_custom_call.1} parent=5 // pred_region
        // Predicated region
        $region21: #{tpu_custom_call.1} parent=19 // pred_check
          %p166 = pneg %p61
        $region22: #{tpu_custom_call.1} parent=19 // pred_check_branch
          %168 = sbr.rel (%p166) target = $region24
        $region23: #{tpu_custom_call.1} parent=19 // pred_region
          %s169 = sand.u32 %s51, 1
          %s170 = scalar_lea.sflag [#allocation3], %s169
          %s171 = sand.u32 %s51, 1
          %s172 = smul.addr %s171, 128
          %s173 = scalar_lea.vmem [#allocation2], %s172
          %s174 = smul.u32 2, %s27
          %176 = vsyncadd %s170, 0
          %s177 = smul.addr %s26, 32
          %s178 = sadd.s32 %s174, %s177
          %s179 = smul.addr %s25, 64
          %s180 = sadd.s32 %s178, %s179
          %s181 = smul.addr %s180, 4
          %s182 = scalar_lea.hbm %s0, %s181
          %s183 = sshll.u32 %s182, 4
          %s184 = int_to_ptr.hbm [resolvable:$true] %s183
          %s185 = sshll.u32 %s173, 4
          %s186 = int_to_ptr.vmem [resolvable:$true] %s185
          %191 = dma.hbm_to_vmem [thread:$0]  %s184, 2048, %s186, %s170, 128, 128, 8
        $region24: #{tpu_custom_call.1} parent=19 // pred_fallthru
          _
        // Predicated region
        $region25: #{tpu_custom_call.1} parent=19 // pred_check
          %p192 = pneg %p87
        $region26: #{tpu_custom_call.1} parent=19 // pred_check_branch
          %194 = sbr.rel (%p192) target = $region28
        $region27: #{tpu_custom_call.1} parent=19 // pred_region
          %s195 = sand.u32 %s77, 1
          %s196 = scalar_lea.sflag [#allocation6], %s195
          %s197 = sand.u32 %s77, 1
          %s198 = smul.addr %s197, 4
          %s199 = scalar_lea.vmem [#allocation5], %s198
          %201 = vsyncadd %s196, 0
          %s202 = smul.addr %s25, 4
          %s203 = scalar_lea.hbm %s1, %s202
          %s205 = sshll.u32 %s203, 4
          %s206 = int_to_ptr.hbm [resolvable:$true] %s205
          %s207 = sshll.u32 %s199, 4
          %s208 = int_to_ptr.vmem [resolvable:$true] %s207
          %210 = dma.hbm_to_vmem [thread:$0]  %s206, 64, %s208, %s196
        $region28: #{tpu_custom_call.1} parent=19 // pred_fallthru
          _
      $region20: #{tpu_custom_call.1} parent=5 // pred_fallthru
        _
      %p211 = scmp.le.s32.totalorder 1, %s18
      %p212 = scmp.lt.s32.totalorder %s18, 9
      %p213 = pnand %p211, %p212
      %p214 = pneg %p213
      // Predicated region
      $region29: #{tpu_custom_call.1} parent=5 // pred_check
        _
      $region30: #{tpu_custom_call.1} parent=5 // pred_check_branch
        %216 = sbr.rel (%p213) target = $region32
      $region31: #{tpu_custom_call.1} parent=5 // pred_region
        %s217 = ssub.s32 %s18, 1
        %s218 = sand.u32 %s54, 1
        %s219 = scalar_lea.sflag [#allocation3], %s218
        %s220 = sand.u32 %s54, 1
        %s221 = smul.addr %s220, 128
        %s222 = scalar_lea.vmem [#allocation2], %s221
        // Predicated region
        $region33: #{tpu_custom_call.1} parent=31 // pred_check
          %p223 = pneg %p67
        $region34: #{tpu_custom_call.1} parent=31 // pred_check_branch
          %225 = sbr.rel (%p223) target = $region36
        $region35: #{tpu_custom_call.1} parent=31 // pred_region
          %227 = dma.done %s219, 2048
        $region36: #{tpu_custom_call.1} parent=31 // pred_fallthru
          _
        %s228 = sand.u32 %s80, 1
        %s229 = scalar_lea.sflag [#allocation6], %s228
        %s230 = sand.u32 %s80, 1
        %s231 = smul.addr %s230, 4
        %s232 = scalar_lea.vmem [#allocation5], %s231
        // Predicated region
        $region37: #{tpu_custom_call.1} parent=31 // pred_check
          %p233 = pneg %p93
        $region38: #{tpu_custom_call.1} parent=31 // pred_check_branch
          %235 = sbr.rel (%p233) target = $region40
        $region39: #{tpu_custom_call.1} parent=31 // pred_region
          %237 = dma.done %s229, 64
        $region40: #{tpu_custom_call.1} parent=31 // pred_fallthru
          _
        %s238 = sand.u32 %s54, 1
        %s239 = scalar_lea.sflag [#allocation3], %s238
        %s240 = sand.u32 %s54, 1
        %s241 = smul.addr %s240, 128
        %s242 = scalar_lea.vmem [#allocation2], %s241
        %p243 = pneg %p67
        %p244 = pneg %p64
        %s245 = sand.u32 %s80, 1
        %s246 = scalar_lea.sflag [#allocation6], %s245
        %s247 = sand.u32 %s80, 1
        %s248 = smul.addr %s247, 4
        %s249 = scalar_lea.vmem [#allocation5], %s248
        %p250 = pneg %p93
        %p251 = pneg %p90
        %p252 = pneg %p114
        %p253 = pneg %p111
        %p254 = pneg %p144
        %p255 = pneg %p141
        %s256 = sand.u32 %s131, 1
        %s257 = scalar_lea.sflag [#allocation4], %s256
        %s258 = sand.u32 %s131, 1
        %s259 = smul.addr %s258, 16
        %s260 = scalar_lea.vmem [#allocation7], %s259
        %s261 = smul.u32 2, %s30
        %s262 = smul.u32 2, %s30
        %v263 = vld [vmem:[%s232] sm:$0xf]
        %v264 = vld [vmem:[%s222] sm:$0xff]
        %v265 = vld [vmem:[%s222 + $0x8] sm:$0xff]
        %v266 = vld [vmem:[%s222 + $0x10] sm:$0xff]
        %v267 = vld [vmem:[%s222 + $0x18] sm:$0xff]
        %v268 = vld [vmem:[%s222 + $0x20] sm:$0xff]
        %v269 = vld [vmem:[%s222 + $0x28] sm:$0xff]
        %v270 = vld [vmem:[%s222 + $0x30] sm:$0xff]
        %v271 = vld [vmem:[%s222 + $0x38] sm:$0xff]
        %v272 = vld [vmem:[%s222 + $0x40] sm:$0xff]
        %v273 = vld [vmem:[%s222 + $0x48] sm:$0xff]
        %v274 = vld [vmem:[%s222 + $0x50] sm:$0xff]
        %v275 = vld [vmem:[%s222 + $0x58] sm:$0xff]
        %v276 = vld [vmem:[%s222 + $0x60] sm:$0xff]
        %v277 = vld [vmem:[%s222 + $0x68] sm:$0xff]
        %v278 = vld [vmem:[%s222 + $0x70] sm:$0xff]
        %v279 = vld [vmem:[%s222 + $0x78] sm:$0xff]
        %v280 = vld [vmem:[%s2] sm:$0xff]
        %282 = vset.pattern.permute.xlu0 0
        %283 = vperm.xlu0 %282, %v280
        %v284 = vpop.permute.xlu0 %283
        %v302 = vunpack.c.l.b16 %v264
        %v303 = vunpack.c.h.b16 %v264
        %v304 = vunpack.c.l.b16 %v265
        %v305 = vunpack.c.h.b16 %v265
        %v306 = vunpack.c.l.b16 %v266
        %v307 = vunpack.c.h.b16 %v266
        %v308 = vunpack.c.l.b16 %v267
        %v309 = vunpack.c.h.b16 %v267
        %v310 = vunpack.c.l.b16 %v268
        %v311 = vunpack.c.h.b16 %v268
        %v312 = vunpack.c.l.b16 %v269
        %v313 = vunpack.c.h.b16 %v269
        %v314 = vunpack.c.l.b16 %v270
        %v315 = vunpack.c.h.b16 %v270
        %v316 = vunpack.c.l.b16 %v271
        %v317 = vunpack.c.h.b16 %v271
        %v318 = vunpack.c.l.b16 %v272
        %v319 = vunpack.c.h.b16 %v272
        %v320 = vunpack.c.l.b16 %v273
        %v321 = vunpack.c.h.b16 %v273
        %v322 = vunpack.c.l.b16 %v274
        %v323 = vunpack.c.h.b16 %v274
        %v324 = vunpack.c.l.b16 %v275
        %v325 = vunpack.c.h.b16 %v275
        %v326 = vunpack.c.l.b16 %v276
        %v327 = vunpack.c.h.b16 %v276
        %v328 = vunpack.c.l.b16 %v277
        %v329 = vunpack.c.h.b16 %v277
        %v330 = vunpack.c.l.b16 %v278
        %v331 = vunpack.c.h.b16 %v278
        %v332 = vunpack.c.l.b16 %v279
        %v333 = vunpack.c.h.b16 %v279
        %v334 = vpack.c.b16 %v304, %v302
        %v335 = vpack.c.b16 %v305, %v303
        %v336 = vpack.c.b16 %v308, %v306
        %v337 = vpack.c.b16 %v309, %v307
        %v338 = vpack.c.b16 %v312, %v310
        %v339 = vpack.c.b16 %v313, %v311
        %v340 = vpack.c.b16 %v316, %v314
        %v341 = vpack.c.b16 %v317, %v315
        %v342 = vpack.c.b16 %v320, %v318
        %v343 = vpack.c.b16 %v321, %v319
        %v344 = vpack.c.b16 %v324, %v322
        %v345 = vpack.c.b16 %v325, %v323
        %v346 = vpack.c.b16 %v328, %v326
        %v347 = vpack.c.b16 %v329, %v327
        %v348 = vpack.c.b16 %v332, %v330
        %v349 = vpack.c.b16 %v333, %v331
        %366 = vmatpush.bf16.msra.mxu0 %v348
        %367 = vmatpush.bf16.msra.mxu0 %v346
        %368 = vmatpush.bf16.msra.mxu0 %v344
        %369 = vmatpush.bf16.msra.mxu0 %v342
        %370 = vmatpush.bf16.msra.mxu0 %v340
        %371 = vmatpush.bf16.msra.mxu0 %v338
        %372 = vmatpush.bf16.msra.mxu0 %v336
        %373 = vmatpush.bf16.msra.mxu0 %v334
        %374 = vmatmul.bf16.gmra.mxu0 %v263
        %v375 = vpop.f32.mrf.mxu0
        %v376 = vadd.f32 %v284, %v375
        %v377 = vpop.f32.mrf.mxu0
        %378 = vdwg.mxu0
        %379 = vmatpush.bf16.msra.mxu0 %v349
        %380 = vmatpush.bf16.msra.mxu0 %v347
        %381 = vmatpush.bf16.msra.mxu0 %v345
        %382 = vmatpush.bf16.msra.mxu0 %v343
        %383 = vmatpush.bf16.msra.mxu0 %v341
        %384 = vmatpush.bf16.msra.mxu0 %v339
        %385 = vmatpush.bf16.msra.mxu0 %v337
        %386 = vmatpush.bf16.msra.mxu0 %v335
        %387 = vmatmul.bf16.gmra.mxu0 %v263
        %v388 = vpop.f32.mrf.mxu0
        %v389 = vadd.f32 %v284, %v388
        %v390 = vpop.f32.mrf.mxu0
        %391 = vdwg.mxu0
        %392 = vst [vmem:[%s260] sm:$0xff] %v376
        %393 = vst [vmem:[%s260 + $0x8] sm:$0xff] %v389
        %s394 = sand.u32 %s131, 1
        %s395 = scalar_lea.sflag [#allocation4], %s394
        %s396 = sand.u32 %s131, 1
        %s397 = smul.addr %s396, 16
        %s398 = scalar_lea.vmem [#allocation7], %s397
        // Predicated region
        $region41: #{tpu_custom_call.1} parent=31 // pred_check
          %p399 = pneg %p141
        $region42: #{tpu_custom_call.1} parent=31 // pred_check_branch
          %401 = sbr.rel (%p399) target = $region44
        $region43: #{tpu_custom_call.1} parent=31 // pred_region
          %s402 = smul.u32 2, %s30
          %404 = vsyncadd %s395, 0
          %s405 = smul.addr %s29, 2
          %s406 = sadd.s32 %s402, %s405
          %s407 = smul.addr %s28, 4
          %s408 = sadd.s32 %s406, %s407
          %s409 = smul.addr %s408, 8
          %s410 = scalar_lea.hbm %s3, %s409
          %s412 = sshll.u32 %s398, 4
          %s413 = int_to_ptr.vmem [resolvable:$true] %s412
          %s414 = sshll.u32 %s410, 4
          %s415 = int_to_ptr.hbm [resolvable:$true] %s414
          %417 = dma.vmem_to_hbm [thread:$0]  %s413, 256, %s415, %s395
        $region44: #{tpu_custom_call.1} parent=31 // pred_fallthru
          _
      $region32: #{tpu_custom_call.1} parent=5 // pred_fallthru
        _
      %p418 = scmp.le.s32.totalorder 2, %s18
      // Predicated region
      $region45: #{tpu_custom_call.1} parent=5 // pred_check
        %p419 = pneg %p418
      $region46: #{tpu_custom_call.1} parent=5 // pred_check_branch
        %421 = sbr.rel (%p419) target = $region48
      $region47: #{tpu_custom_call.1} parent=5 // pred_region
        %s422 = ssub.s32 %s18, 2
        // Predicated region
        $region49: #{tpu_custom_call.1} parent=47 // pred_check
          %p423 = pneg %p147
        $region50: #{tpu_custom_call.1} parent=47 // pred_check_branch
          %425 = sbr.rel (%p423) target = $region52
        $region51: #{tpu_custom_call.1} parent=47 // pred_region
          %s426 = sand.u32 %s132, 1
          %s427 = scalar_lea.sflag [#allocation4], %s426
          %s428 = sand.u32 %s132, 1
          %s429 = smul.addr %s428, 16
          %s430 = scalar_lea.vmem [#allocation7], %s429
          %432 = dma.done %s427, 256
        $region52: #{tpu_custom_call.1} parent=47 // pred_fallthru
          _
      $region48: #{tpu_custom_call.1} parent=5 // pred_fallthru
        _
    $region6: #{tpu_custom_call.1} parent=1 // loop_footer
      %s22 = sadd.s32 1, %s18
    $region7: #{tpu_custom_call.1} parent=1 // loop_footer_branch
      %17 = sbr.rel target = $region3
    $region8: #{tpu_custom_call.1} parent=1 // loop_exit
      _
    %433 = vsyncpa [#allocation3], 1
    %s434 = scalar_lea.sflag [#allocation3], 1
    %435 = vsyncpa %s434, 1
    %436 = vsyncpa [#allocation6], 1
    %s437 = scalar_lea.sflag [#allocation6], 1
    %438 = vsyncpa %s437, 1
    %439 = vsyncpa [#allocation4], 1
    %s440 = scalar_lea.sflag [#allocation4], 1
    %441 = vsyncpa %s440, 1

</llo_original>
